<compile_context>
chip_gen: v6e
topology: v6e:2x2x1
jax: 0.10.0
libtpu: 0.0.40
codegen_flags: <defaults>
</compile_context>

<pallas_src>
import functools
import math

import jax
import jax.numpy as jnp
from jax.experimental import pallas as pl
from jax.experimental.pallas import tpu as pltpu


# ---------------- Hyperparameters (synthetic, small) ----------------
class HP:
    input_size = 4        # C_in of first layer
    out_channels = 8      # C_out of every layer
    kernel_size = 3       # with F.pad(1, 1) this keeps the sequence length
    num_cnn_layers = 2
    cnn_dropout_rate = 0.1  # identity at inference


# ---------------- Fused Pallas kernel: all layers for one batch block ----------------
def _cnn_fused_kernel(*refs, num_layers, seq_len):
    """refs = (x_ref, w_0, b_0, ..., w_{n-1}, b_{n-1}, o_ref)

      x_ref : (C_in, B_blk * L)       activations, batch*length flattened on the lane axis
      w_i   : (C_out_i, 3 * C_in_i)   im2col-folded weights (tap-major columns)
      b_i   : (C_out_i, 1)            f32 bias (broadcasts over lanes)
      o_ref : (C_out_last, B_blk * L)
    """
    x_ref = refs[0]
    wb_refs = refs[1:1 + 2 * num_layers]
    o_ref = refs[1 + 2 * num_layers]

    lanes = x_ref.shape[-1]
    io_dtype = x_ref.dtype
    L = seq_len

    # Hoisted per-sequence halo masks over the flattened (batch, length) lane axis:
    # zero the column that would read across a sequence boundary for each shifted tap.
    pos = jax.lax.broadcasted_iota(jnp.int32, (1, lanes), 1) % L
    keep_prev = (pos != 0).astype(jnp.float32)       # for the tap reading x[l - 1]
    keep_next = (pos != L - 1).astype(jnp.float32)   # for the tap reading x[l + 1]

    # Activations stay in vregs (f32 working copy) across the whole layer stack.
    act = x_ref[...].astype(jnp.float32)
    for i in range(num_layers):
        w_ref = wb_refs[2 * i]                       # (C_out, 3*C_in)
        b_ref = wb_refs[2 * i + 1]                   # (C_out, 1), f32

        # Shifted taps via lane rolls + hoisted masks; stack them on the contraction axis
        # (im2col), so the whole conv layer is a single MXU matmul.
        prev_tap = jnp.roll(act, 1, axis=1) * keep_prev     # x[l - 1]
        next_tap = jnp.roll(act, -1, axis=1) * keep_next    # x[l + 1]
        slab = jnp.concatenate([prev_tap, act, next_tap], axis=0)   # (3*C_in, lanes), f32
        slab = slab.astype(io_dtype)                         # bf16 MXU operands when I/O is bf16

        y = jnp.dot(w_ref[...], slab, preferred_element_type=jnp.float32)
        act = jnp.maximum(y + b_ref[...], 0.0)               # bias + ReLU on the VPU, in f32
        # TODO(synk): dropout = identity (eval mode); training-mode RNG not implemented.

    o_ref[...] = act.astype(o_ref.dtype)


# ---------------- Batch-block choice (lane-density heuristic) ----------------
def _choose_batch_block(n, seq_len, *, lane_target=512, single_block_max_lanes=4096):
    """How many batch elements share one grid step (flattened onto the lane axis)."""
    if n * seq_len <= single_block_max_lanes:
        return n, n                                    # one block, no batch padding
    step = 128 // math.gcd(seq_len, 128)               # smallest b with (b * L) % 128 == 0
    b_blk = step * max(1, math.ceil(lane_target / (step * seq_len)))
    n_pad = math.ceil(n / b_blk) * b_blk
    return b_blk, n_pad


# ---------------- Wrapper ----------------
def cnn_encoder_forward(x_ncl, params, *, kernel_size):
    """CNNEncoder forward. x_ncl: (N, C_in, L) as in PyTorch. Returns (N, C_out, L).

    params: list of (w, b), w in PyTorch Conv1d layout (C_out, C_in, K), b of shape (C_out,).
    Compute/IO dtype follows x_ncl.dtype (pass bf16 for bf16 HBM I/O + bf16 MXU operands on
    v6e/v7x); accumulation, bias and ReLU stay f32 inside the kernel.
    """
    N, C_in, L = x_ncl.shape
    K = kernel_size
    assert K == 3, "F.pad(1, 1) + kernel_size == 3 is the length-preserving case"
    num_layers = len(params)
    dtype = x_ncl.dtype
    c_out_final = params[-1][0].shape[0]

    b_blk, n_pad = _choose_batch_block(N, L)
    lane_blk = b_blk * L

    # Lane-dense HBM layout: (C, N*L). The transpose/reshape is XLA-side layout plumbing.
    x2 = jnp.transpose(x_ncl, (1, 0, 2))               # (C_in, N, L)
    if n_pad != N:
        x2 = jnp.pad(x2, ((0, 0), (0, n_pad - N), (0, 0)))
    x2 = x2.reshape(C_in, n_pad * L)

    in_specs = [pl.BlockSpec((C_in, lane_blk), lambda i: (0, i))]
    flat_args = [x2]
    c_prev = C_in
    for (w, b) in params:
        co, ci, kk = w.shape
        assert kk == K and ci == c_prev, (w.shape, K, c_prev)
        # im2col fold: column (k*C_in + ci) of w2 is w[co, ci, k] -> matches the slab row order.
        w2 = jnp.transpose(w, (0, 2, 1)).reshape(co, kk * ci).astype(dtype)
        b2 = jnp.asarray(b, jnp.float32).reshape(co, 1)
        in_specs += [pl.BlockSpec((co, kk * ci), lambda i: (0, 0)),
                     pl.BlockSpec((co, 1), lambda i: (0, 0))]
        flat_args += [w2, b2]
        c_prev = co

    kernel = functools.partial(_cnn_fused_kernel, num_layers=num_layers, seq_len=L)

    y2 = pl.pallas_call(
        kernel,
        out_shape=jax.ShapeDtypeStruct((c_out_final, n_pad * L), dtype),
        grid_spec=pltpu.PrefetchScalarGridSpec(
            num_scalar_prefetch=0,
            grid=(n_pad // b_blk,),
            in_specs=in_specs,
            out_specs=pl.BlockSpec((c_out_final, lane_blk), lambda i: (0, i)),
        ),
        compiler_params=pltpu.CompilerParams(
            dimension_semantics=("parallel",),
        ),
    )(*flat_args)

    y = y2.reshape(c_out_final, n_pad, L)
    y = jnp.transpose(y, (1, 0, 2))                    # back to (N_pad, C_out, L)
    return y[:N]


# ---------------- Parameter init (synthetic, PyTorch-Conv1d-like) ----------------
def init_params(hp, key):
    params = []
    for i in range(hp.num_cnn_layers):
        c_in = hp.input_size if i == 0 else hp.out_channels
        c_out = hp.out_channels
        key, kw, kb = jax.random.split(key, 3)
        bound = float((c_in * hp.kernel_size) ** -0.5)
        w = jax.random.uniform(kw, (c_out, c_in, hp.kernel_size), jnp.float32, -bound, bound)
        b = jax.random.uniform(kb, (c_out,), jnp.float32, -bound, bound)
        params.append((w, b))
    return params


# ---------------- Pure-JAX reference (for sanity) ----------------
def cnn_encoder_reference(x_ncl, params):
    x = x_ncl.astype(jnp.float32)
    for (w, b) in params:
        x = jnp.pad(x, ((0, 0), (0, 0), (1, 1)))
        y = jax.lax.conv_general_dilated(
            x, w.astype(jnp.float32), window_strides=(1,), padding="VALID",
            dimension_numbers=("NCH", "OIH", "NCH"),
            precision=jax.lax.Precision.HIGHEST)
        x = jnp.maximum(y + b.reshape(1, -1, 1), 0.0)
    return x


if __name__ == "__main__":
    hp = HP()
    key = jax.random.PRNGKey(0)
    key, kx = jax.random.split(key)

    N, L = 2, 16
    x = jax.random.normal(kx, (N, hp.input_size, L), jnp.float32)   # PyTorch NCL input
    params = init_params(hp, key)

    ref = cnn_encoder_reference(x, params)

    # f32 run. Tolerance covers the MXU's default f32 matmul precision modes.
    out = cnn_encoder_forward(x, params, kernel_size=hp.kernel_size)
    out = jax.block_until_ready(out)
    assert out.shape == ref.shape, (out.shape, ref.shape)
    assert jnp.allclose(out, ref, atol=2e-2, rtol=2e-2), "f32 mismatch vs reference"

    # bf16 HBM-I/O run (v6e/v7x memory-roofline optimization); f32 accumulation inside.
    x_bf = x.astype(jnp.bfloat16)
    params_bf = [(w.astype(jnp.bfloat16), b) for (w, b) in params]
    out_bf = cnn_encoder_forward(x_bf, params_bf, kernel_size=hp.kernel_size)
    out_bf = jax.block_until_ready(out_bf)
    # Compare against the reference evaluated on the same bf16-rounded inputs/weights.
    ref_bf = cnn_encoder_reference(
        x_bf.astype(jnp.float32),
        [(w.astype(jnp.bfloat16).astype(jnp.float32), b) for (w, b) in params])
    assert out_bf.shape == ref.shape, (out_bf.shape, ref.shape)
    assert jnp.allclose(out_bf.astype(jnp.float32), ref_bf, atol=5e-2, rtol=5e-2), \
        "bf16 mismatch vs reference"

    print("KERNEL_OK")
</pallas_src>

<mosaic_0001>
module attributes {stable_mosaic.version = 11 : i64} {
  func.func @_cnn_fused_kernel(%arg0: i32, %arg1: memref<4x32xf32, #tpu.memory_space<vmem>>, %arg2: memref<8x12xf32, #tpu.memory_space<vmem>>, %arg3: memref<8x1xf32, #tpu.memory_space<vmem>>, %arg4: memref<8x24xf32, #tpu.memory_space<vmem>>, %arg5: memref<8x1xf32, #tpu.memory_space<vmem>>, %arg6: memref<8x32xf32, #tpu.memory_space<vmem>>) attributes {dimension_semantics = [#tpu.dimension_semantics<parallel>], iteration_bounds = array<i64: 1>, scalar_prefetch = 0 : i64, scratch_operands = 0 : i64, tpu.core_type = #tpu.core_type<tc>, window_params = [{transform_indices = @transform_0, window_bounds = array<i64: 4, 32>}, {pipeline_mode = #tpu.pipeline_mode<synchronous>, transform_indices = @transform_1, window_bounds = array<i64: 8, 12>}, {pipeline_mode = #tpu.pipeline_mode<synchronous>, transform_indices = @transform_2, window_bounds = array<i64: 8, 1>}, {pipeline_mode = #tpu.pipeline_mode<synchronous>, transform_indices = @transform_3, window_bounds = array<i64: 8, 24>}, {pipeline_mode = #tpu.pipeline_mode<synchronous>, transform_indices = @transform_4, window_bounds = array<i64: 8, 1>}, {transform_indices = @transform_5, window_bounds = array<i64: 8, 32>}]} {
    %0 = tpu.iota {dimensions = array<i32: 1>} : vector<1x32xi32>
    %c16_i32 = arith.constant 16 : i32
    %c0_i32 = arith.constant 0 : i32
    %1 = arith.cmpi eq, %c16_i32, %c0_i32 : i32
    %c1_i32 = arith.constant 1 : i32
    %2 = arith.select %1, %c1_i32, %c16_i32 : i32
    %3 = vector.broadcast %2 : i32 to vector<1x32xi32>
    %4 = arith.remsi %0, %3 : vector<1x32xi32>
    %c0_i32_0 = arith.constant 0 : i32
    %5 = vector.broadcast %c0_i32_0 : i32 to vector<1x32xi32>
    %6 = arith.cmpi ne, %4, %5 : vector<1x32xi32>
    %c0_i32_1 = arith.constant 0 : i32
    %7 = vector.broadcast %c0_i32_1 : i32 to vector<1x32xi32>
    %8 = arith.cmpi slt, %4, %7 : vector<1x32xi32>
    %c0_i32_2 = arith.constant 0 : i32
    %9 = arith.cmpi slt, %2, %c0_i32_2 : i32
    %10 = vector.broadcast %9 : i1 to vector<1x32xi1>
    %11 = vector.broadcast %10 : vector<1x32xi1> to vector<1x32xi1>
    %12 = arith.xori %8, %11 : vector<1x32xi1>
    %13 = arith.andi %12, %6 : vector<1x32xi1>
    %14 = vector.broadcast %2 : i32 to vector<1x32xi32>
    %15 = arith.addi %4, %14 : vector<1x32xi32>
    %16 = arith.select %13, %15, %4 : vector<1x32xi1>, vector<1x32xi32>
    %c0_i32_3 = arith.constant 0 : i32
    %17 = vector.broadcast %c0_i32_3 : i32 to vector<1x32xi32>
    %18 = arith.cmpi ne, %16, %17 : vector<1x32xi32>
    %19 = arith.extui %18 : vector<1x32xi1> to vector<1x32xi32>
    %20 = arith.sitofp %19 : vector<1x32xi32> to vector<1x32xf32>
    %c15_i32 = arith.constant 15 : i32
    %21 = vector.broadcast %c15_i32 : i32 to vector<1x32xi32>
    %22 = arith.cmpi ne, %16, %21 : vector<1x32xi32>
    %23 = arith.extui %22 : vector<1x32xi1> to vector<1x32xi32>
    %24 = arith.sitofp %23 : vector<1x32xi32> to vector<1x32xf32>
    %c0 = arith.constant 0 : index
    %c0_4 = arith.constant 0 : index
    %25 = vector.load %arg1[%c0, %c0_4] : memref<4x32xf32, #tpu.memory_space<vmem>>, vector<4x32xf32>
    %26 = vector.extract_strided_slice %25 {offsets = [0, 31], sizes = [4, 1], strides = [1, 1]} : vector<4x32xf32> to vector<4x1xf32>
    %27 = vector.extract_strided_slice %25 {offsets = [0, 0], sizes = [4, 31], strides = [1, 1]} : vector<4x32xf32> to vector<4x31xf32>
    %28 = tpu.concatenate %26, %27 in 1 : vector<4x1xf32>, vector<4x31xf32> -> vector<4x32xf32>
    %29 = vector.broadcast %20 : vector<1x32xf32> to vector<4x32xf32>
    %30 = arith.mulf %28, %29 : vector<4x32xf32>
    %31 = vector.extract_strided_slice %25 {offsets = [0, 1], sizes = [4, 31], strides = [1, 1]} : vector<4x32xf32> to vector<4x31xf32>
    %32 = vector.extract_strided_slice %25 {offsets = [0, 0], sizes = [4, 1], strides = [1, 1]} : vector<4x32xf32> to vector<4x1xf32>
    %33 = tpu.concatenate %31, %32 in 1 : vector<4x31xf32>, vector<4x1xf32> -> vector<4x32xf32>
    %34 = vector.broadcast %24 : vector<1x32xf32> to vector<4x32xf32>
    %35 = arith.mulf %33, %34 : vector<4x32xf32>
    %36 = tpu.concatenate %30, %25, %35 in 0 : vector<4x32xf32>, vector<4x32xf32>, vector<4x32xf32> -> vector<12x32xf32>
    %c0_5 = arith.constant 0 : index
    %c0_6 = arith.constant 0 : index
    %37 = vector.load %arg2[%c0_5, %c0_6] : memref<8x12xf32, #tpu.memory_space<vmem>>, vector<8x12xf32>
    %cst = arith.constant dense<0.000000e+00> : vector<8x32xf32>
    %38 = tpu.matmul %37, %36, %cst {dimension_numbers = #tpu.dot_dimension_numbers<[1], [0], [0], [1], [0, 0, 1, 1], [], []>} : vector<8x12xf32>, vector<12x32xf32>, vector<8x32xf32> -> vector<8x32xf32>
    %c0_7 = arith.constant 0 : index
    %c0_8 = arith.constant 0 : index
    %39 = vector.load %arg3[%c0_7, %c0_8] : memref<8x1xf32, #tpu.memory_space<vmem>>, vector<8x1xf32>
    %40 = vector.broadcast %39 : vector<8x1xf32> to vector<8x32xf32>
    %41 = arith.addf %38, %40 : vector<8x32xf32>
    %cst_9 = arith.constant 0.000000e+00 : f32
    %42 = vector.broadcast %cst_9 : f32 to vector<8x32xf32>
    %43 = arith.maximumf %41, %42 : vector<8x32xf32>
    %44 = vector.extract_strided_slice %43 {offsets = [0, 31], sizes = [8, 1], strides = [1, 1]} : vector<8x32xf32> to vector<8x1xf32>
    %45 = vector.extract_strided_slice %43 {offsets = [0, 0], sizes = [8, 31], strides = [1, 1]} : vector<8x32xf32> to vector<8x31xf32>
    %46 = tpu.concatenate %44, %45 in 1 : vector<8x1xf32>, vector<8x31xf32> -> vector<8x32xf32>
    %47 = vector.broadcast %20 : vector<1x32xf32> to vector<8x32xf32>
    %48 = arith.mulf %46, %47 : vector<8x32xf32>
    %49 = vector.extract_strided_slice %43 {offsets = [0, 1], sizes = [8, 31], strides = [1, 1]} : vector<8x32xf32> to vector<8x31xf32>
    %50 = vector.extract_strided_slice %43 {offsets = [0, 0], sizes = [8, 1], strides = [1, 1]} : vector<8x32xf32> to vector<8x1xf32>
    %51 = tpu.concatenate %49, %50 in 1 : vector<8x31xf32>, vector<8x1xf32> -> vector<8x32xf32>
    %52 = vector.broadcast %24 : vector<1x32xf32> to vector<8x32xf32>
    %53 = arith.mulf %51, %52 : vector<8x32xf32>
    %54 = tpu.concatenate %48, %43, %53 in 0 : vector<8x32xf32>, vector<8x32xf32>, vector<8x32xf32> -> vector<24x32xf32>
    %c0_10 = arith.constant 0 : index
    %c0_11 = arith.constant 0 : index
    %55 = vector.load %arg4[%c0_10, %c0_11] : memref<8x24xf32, #tpu.memory_space<vmem>>, vector<8x24xf32>
    %cst_12 = arith.constant dense<0.000000e+00> : vector<8x32xf32>
    %56 = tpu.matmul %55, %54, %cst_12 {dimension_numbers = #tpu.dot_dimension_numbers<[1], [0], [0], [1], [0, 0, 1, 1], [], []>} : vector<8x24xf32>, vector<24x32xf32>, vector<8x32xf32> -> vector<8x32xf32>
    %c0_13 = arith.constant 0 : index
    %c0_14 = arith.constant 0 : index
    %57 = vector.load %arg5[%c0_13, %c0_14] : memref<8x1xf32, #tpu.memory_space<vmem>>, vector<8x1xf32>
    %58 = vector.broadcast %57 : vector<8x1xf32> to vector<8x32xf32>
    %59 = arith.addf %56, %58 : vector<8x32xf32>
    %cst_15 = arith.constant 0.000000e+00 : f32
    %60 = vector.broadcast %cst_15 : f32 to vector<8x32xf32>
    %61 = arith.maximumf %59, %60 : vector<8x32xf32>
    %c0_16 = arith.constant 0 : index
    %c0_17 = arith.constant 0 : index
    %62 = vector.load %arg6[%c0_16, %c0_17] : memref<8x32xf32, #tpu.memory_space<vmem>>, vector<8x32xf32>
    tpu.vector_store %arg6[%c0_16, %c0_17], %61 {strides = array<i32>} : memref<8x32xf32, #tpu.memory_space<vmem>>, vector<8x32xf32>,
    return
  }
  func.func @transform_0(%arg0: i32) -> (i32, i32) {
    %c0_i32 = arith.constant 0 : i32
    %c0_i32_0 = arith.constant 0 : i32
    return %c0_i32, %arg0 : i32, i32
  }
  func.func @transform_1(%arg0: i32) -> (i32, i32) {
    %c0_i32 = arith.constant 0 : i32
    %c0_i32_0 = arith.constant 0 : i32
    %c0_i32_1 = arith.constant 0 : i32
    return %c0_i32, %c0_i32_0 : i32, i32
  }
  func.func @transform_2(%arg0: i32) -> (i32, i32) {
    %c0_i32 = arith.constant 0 : i32
    %c0_i32_0 = arith.constant 0 : i32
    %c0_i32_1 = arith.constant 0 : i32
    return %c0_i32, %c0_i32_0 : i32, i32
  }
  func.func @transform_3(%arg0: i32) -> (i32, i32) {
    %c0_i32 = arith.constant 0 : i32
    %c0_i32_0 = arith.constant 0 : i32
    %c0_i32_1 = arith.constant 0 : i32
    return %c0_i32, %c0_i32_0 : i32, i32
  }
  func.func @transform_4(%arg0: i32) -> (i32, i32) {
    %c0_i32 = arith.constant 0 : i32
    %c0_i32_0 = arith.constant 0 : i32
    %c0_i32_1 = arith.constant 0 : i32
    return %c0_i32, %c0_i32_0 : i32, i32
  }
  func.func @transform_5(%arg0: i32) -> (i32, i32) {
    %c0_i32 = arith.constant 0 : i32
    %c0_i32_0 = arith.constant 0 : i32
    return %c0_i32, %arg0 : i32, i32
  }
}

</mosaic_0001>

<llo_original>
// kernel: tpu_custom_call.1
$region0: #{tpu_custom_call.1}
  #allocation0 [shape = 'u32[]', space=smem, size = 0x4, offset = 0x4, fixed_abs, tag = 'smem constant byte address 0x4 - core index']
  #allocation1 [shape = 'u32[144,128]{1,0:T(1,128)}', space=vmem, size = 0x12000, scoped, tag = 'internal scratch']
  %s0 = inlined_call_operand.hbm [shape: f32[4,32], index: 0, kind: input, shape index: {}]
  %s1 = inlined_call_operand.vmem [shape: f32[8,12], index: 1, kind: input, shape index: {}]
  %s2 = inlined_call_operand.vmem [shape: f32[8,1], index: 2, kind: input, shape index: {}]
  %s3 = inlined_call_operand.vmem [shape: f32[8,24], index: 3, kind: input, shape index: {}]
  %s4 = inlined_call_operand.vmem [shape: f32[8,1], index: 4, kind: input, shape index: {}]
  %s5 = inlined_call_operand.hbm [shape: f32[8,32], index: 5, kind: output, shape index: {}]
  %s6 = sld [smem:[#allocation0]]
  $region34: #{tpu_custom_call.1} parent=0
    _
  %s8 = ssub.s32 1, %s6
  %s9 = scalar_select 0, %s8, %s6
  $region1: #{tpu_custom_call.1} parent=0
    #allocation2 [shape = 'u8[2048]{0}', space=vmem, size = 0x800, scoped, tag = 'input window, operand 0, single buffered']
    #allocation3 [shape = 's32[1]{0}', space=sflag, size = 0x4, scoped, tag = 'scoped memory for tpu_custom_call.1']
    #allocation4 [shape = 's32[1]{0}', space=sflag, size = 0x4, scoped, tag = 'scoped memory for tpu_custom_call.1']
    #allocation5 [shape = 'u8[4096]{0}', space=vmem, size = 0x1000, scoped, tag = 'output window, operand 0, single buffered']
    %10 = vsyncpa [#allocation3], 0
    %11 = vsyncpa [#allocation4], 0
    // Predicated region
    $region2: #{tpu_custom_call.1} parent=1 // pred_check
      _
    $region3: #{tpu_custom_call.1} parent=1 // pred_check_branch
      %13 = sbr.rel (0) target = $region5
    $region4: #{tpu_custom_call.1} parent=1 // pred_region
      %s15 = ssub.s32 64, 64
      %16 = vsyncadd [#allocation3], %s15
      %s18 = sshll.u32 [#allocation2], 4
      %s19 = int_to_ptr.vmem [resolvable:$true] %s18
      %21 = dma.hbm_to_vmem [thread:$0]  %s0, 64, %s19, [#allocation3]
    $region5: #{tpu_custom_call.1} parent=1 // pred_fallthru
      _
    // Predicated region
    $region6: #{tpu_custom_call.1} parent=1 // pred_check
      _
    $region7: #{tpu_custom_call.1} parent=1 // pred_check_branch
      %23 = sbr.rel (0) target = $region9
    $region8: #{tpu_custom_call.1} parent=1 // pred_region
      _
    $region9: #{tpu_custom_call.1} parent=1 // pred_fallthru
      _
    // Predicated region
    $region10: #{tpu_custom_call.1} parent=1 // pred_check
      _
    $region11: #{tpu_custom_call.1} parent=1 // pred_check_branch
      %25 = sbr.rel (0) target = $region13
    $region12: #{tpu_custom_call.1} parent=1 // pred_region
      _
    $region13: #{tpu_custom_call.1} parent=1 // pred_fallthru
      _
    // Predicated region
    $region14: #{tpu_custom_call.1} parent=1 // pred_check
      _
    $region15: #{tpu_custom_call.1} parent=1 // pred_check_branch
      %27 = sbr.rel (0) target = $region17
    $region16: #{tpu_custom_call.1} parent=1 // pred_region
      _
    $region17: #{tpu_custom_call.1} parent=1 // pred_fallthru
      _
    // Predicated region
    $region18: #{tpu_custom_call.1} parent=1 // pred_check
      _
    $region19: #{tpu_custom_call.1} parent=1 // pred_check_branch
      %29 = sbr.rel (0) target = $region21
    $region20: #{tpu_custom_call.1} parent=1 // pred_region
      _
    $region21: #{tpu_custom_call.1} parent=1 // pred_fallthru
      _
    // Predicated region
    $region22: #{tpu_custom_call.1} parent=1 // pred_check
      _
    $region23: #{tpu_custom_call.1} parent=1 // pred_check_branch
      %31 = sbr.rel (0) target = $region25
    $region24: #{tpu_custom_call.1} parent=1 // pred_region
      %32 = dma.done [#allocation3], 64
    $region25: #{tpu_custom_call.1} parent=1 // pred_fallthru
      _
    %v33 = vlaneseq
    %v34 = vand.u32 %v33, 127
    %vm35 = vcmp.lt.s32.totalorder %v34, 0
    %v36 = vsub.s32 0, %v34
    %v37 = vsel %vm35, %v36, %v34
    %v38 = vshrl.u32 %v37, 4
    %v39 = vand.u32 %v37, 15
    %v40 = vsub.s32 0, %v39
    %v41 = vsel %vm35, %v40, %v39
    %vm42 = vcmp.ne.s32.totalorder %v41, 0
    %vm43 = vcmp.lt.s32.totalorder %v41, 0
    %vm44 = vmand %vm43, %vm42
    %v45 = vadd.s32 %v41, 16
    %v46 = vsel %vm44, %v45, %v41
    %vm47 = vcmp.ne.s32.totalorder %v46, 0
    %v48 = vsel %vm47, 1, 0
    %v49 = vcvt.s32.f32 %v48
    %vm50 = vcmp.ne.s32.totalorder %v46, 15
    %v51 = vsel %vm50, 1, 0
    %v52 = vcvt.s32.f32 %v51
    %v53 = vld [vmem:[#allocation2] sm:$0xf]
    %55 = vrot.lane.b32.xlu0 %v53, 97
    %v56 = vpop.permute.xlu0 %55
    %58 = vrot.lane.b32.xlu0 %v53, 1
    %v59 = vpop.permute.xlu0 %58
    %vm61 = vcmask 7168
    %v62 = vsel %vm61, %v56, %v59
    %v63 = vmul.f32 %v62, %v49
    %64 = vrot.lane.b32.xlu0 %v53, 127
    %v65 = vpop.permute.xlu0 %64
    %67 = vrot.lane.b32.xlu0 %v53, 31
    %v68 = vpop.permute.xlu0 %67
    %vm70 = vcmask 252928
    %v71 = vsel %vm70, %v65, %v68
    %v72 = vmul.f32 %v71, %v52
    %v73 = vrot.slane %v53, 4
    %vm75 = vcmask 1043456
    %v76 = vsel %vm75, %v63, %v73
    %v77 = vld [vmem:[%s1] sm:$0xff]
    %v78 = vld [vmem:[%s2] sm:$0xff]
    %80 = vset.pattern.permute.xlu0 0
    %81 = vperm.xlu0 %80, %v78
    %v82 = vpop.permute.xlu0 %81
    %vm84 = vcmask 97280
    %v86 = vsel %vm84, %v77, 0
    %v89 = vsel %vm75, %v72, 0
    %91 = vmatprep.subr.mxu0 0.0
    %92 = vmatpush1.msra.mxu0 0.0
    %93 = vmatprep.subr.mxu0 0.0
    %94 = vmatpush1.msra.mxu0 0.0
    %95 = vmatprep.subr.mxu0 0.0
    %96 = vmatpush1.msra.mxu0 0.0
    %97 = vmatprep.subr.mxu0 0.0
    %98 = vmatpush1.msra.mxu0 0.0
    %99 = vmatprep.subr.mxu0 0.0
    %100 = vmatpush1.msra.mxu0 0.0
    %101 = vmatprep.subr.mxu0 0.0
    %102 = vmatpush1.msra.mxu0 0.0
    %103 = vmatprep.subr.mxu0 0.0
    %104 = vmatpush1.msra.mxu0 0.0
    %105 = vmatprep.subr.mxu0 0.0
    %106 = vmatpush1.msra.mxu0 0.0
    %107 = vmatprep.subr.mxu0 0.0
    %108 = vmatpush1.msra.mxu0 0.0
    %109 = vmatprep.subr.mxu0 0.0
    %110 = vmatpush1.msra.mxu0 0.0
    %111 = vmatprep.subr.mxu0 0.0
    %112 = vmatpush1.msra.mxu0 0.0
    %113 = vmatprep.subr.mxu0 0.0
    %114 = vmatpush1.msra.mxu0 0.0
    %115 = vmatprep.subr.mxu0 0.0
    %116 = vmatpush1.msra.mxu0 0.0
    %117 = vmatprep.subr.mxu0 0.0
    %118 = vmatpush1.msra.mxu0 0.0
    %119 = vmatprep.subr.mxu0 0.0
    %120 = vmatpush1.msra.mxu0 %v89
    %121 = vmatprep.subr.mxu0 0.0
    %122 = vmatpush1.msra.mxu0 %v76
    %123 = vmatprep.subr.mxu0 0.0
    %124 = vmatpush2.msra.mxu0 0.0
    %125 = vmatprep.subr.mxu0 0.0
    %126 = vmatpush2.msra.mxu0 0.0
    %127 = vmatprep.subr.mxu0 0.0
    %128 = vmatpush2.msra.mxu0 0.0
    %129 = vmatprep.subr.mxu0 0.0
    %130 = vmatpush2.msra.mxu0 0.0
    %131 = vmatprep.subr.mxu0 0.0
    %132 = vmatpush2.msra.mxu0 0.0
    %133 = vmatprep.subr.mxu0 0.0
    %134 = vmatpush2.msra.mxu0 0.0
    %135 = vmatprep.subr.mxu0 0.0
    %136 = vmatpush2.msra.mxu0 0.0
    %137 = vmatprep.subr.mxu0 0.0
    %138 = vmatpush2.msra.mxu0 0.0
    %139 = vmatprep.subr.mxu0 0.0
    %140 = vmatpush2.msra.mxu0 0.0
    %141 = vmatprep.subr.mxu0 0.0
    %142 = vmatpush2.msra.mxu0 0.0
    %143 = vmatprep.subr.mxu0 0.0
    %144 = vmatpush2.msra.mxu0 0.0
    %145 = vmatprep.subr.mxu0 0.0
    %146 = vmatpush2.msra.mxu0 0.0
    %147 = vmatprep.subr.mxu0 0.0
    %148 = vmatpush2.msra.mxu0 0.0
    %149 = vmatprep.subr.mxu0 0.0
    %150 = vmatpush2.msra.mxu0 0.0
    %151 = vmatprep.subr.mxu0 0.0
    %152 = vmatpush2.msra.mxu0 0.0
    %153 = vmatprep.subr.mxu0 0.0
    %154 = vmatpush2.msra.mxu0 0.0
    %155 = vmatprep.mubr.f32.mxu0 0.0
    %156 = vmatmul.mubr.f32.gmra.mxu0 %v86
    %v157 = vpop.f32.mrf.mxu0
    %v158 = vadd.f32 %v82, %v157
    %v159 = vpop.f32.mrf.mxu0
    %160 = vdwg.mxu0
    %v161 = vmax.f32 %v158, 0.0
    %163 = vrot.lane.b32.xlu0 %v161, 97
    %v164 = vpop.permute.xlu0 %163
    %166 = vrot.lane.b32.xlu0 %v161, 1
    %v167 = vpop.permute.xlu0 %166
    %v169 = vsel %vm61, %v164, %v167
    %v170 = vmul.f32 %v169, %v49
    %171 = vrot.lane.b32.xlu0 %v161, 127
    %v172 = vpop.permute.xlu0 %171
    %174 = vrot.lane.b32.xlu0 %v161, 31
    %v175 = vpop.permute.xlu0 %174
    %v177 = vsel %vm70, %v172, %v175
    %v178 = vmul.f32 %v177, %v52
    %v179 = vld [vmem:[%s3] sm:$0xff]
    %v180 = vld [vmem:[%s4] sm:$0xff]
    %182 = vset.pattern.permute.xlu0 0
    %183 = vperm.xlu0 %182, %v180
    %v184 = vpop.permute.xlu0 %183
    %vm186 = vcmask 195584
    %v188 = vsel %vm186, %v179, 0
    %190 = vmatprep.subr.mxu0 0.0
    %191 = vmatpush1.msra.mxu0 0.0
    %192 = vmatprep.subr.mxu0 0.0
    %193 = vmatpush1.msra.mxu0 0.0
    %194 = vmatprep.subr.mxu0 0.0
    %195 = vmatpush1.msra.mxu0 0.0
    %196 = vmatprep.subr.mxu0 0.0
    %197 = vmatpush1.msra.mxu0 0.0
    %198 = vmatprep.subr.mxu0 0.0
    %199 = vmatpush1.msra.mxu0 0.0
    %200 = vmatprep.subr.mxu0 0.0
    %201 = vmatpush1.msra.mxu0 0.0
    %202 = vmatprep.subr.mxu0 0.0
    %203 = vmatpush1.msra.mxu0 0.0
    %204 = vmatprep.subr.mxu0 0.0
    %205 = vmatpush1.msra.mxu0 0.0
    %206 = vmatprep.subr.mxu0 0.0
    %207 = vmatpush1.msra.mxu0 0.0
    %208 = vmatprep.subr.mxu0 0.0
    %209 = vmatpush1.msra.mxu0 0.0
    %210 = vmatprep.subr.mxu0 0.0
    %211 = vmatpush1.msra.mxu0 0.0
    %212 = vmatprep.subr.mxu0 0.0
    %213 = vmatpush1.msra.mxu0 0.0
    %214 = vmatprep.subr.mxu0 0.0
    %215 = vmatpush1.msra.mxu0 0.0
    %216 = vmatprep.subr.mxu0 0.0
    %217 = vmatpush1.msra.mxu0 %v178
    %218 = vmatprep.subr.mxu0 0.0
    %219 = vmatpush1.msra.mxu0 %v161
    %220 = vmatprep.subr.mxu0 0.0
    %221 = vmatpush1.msra.mxu0 %v170
    %222 = vmatprep.subr.mxu0 0.0
    %223 = vmatpush2.msra.mxu0 0.0
    %224 = vmatprep.subr.mxu0 0.0
    %225 = vmatpush2.msra.mxu0 0.0
    %226 = vmatprep.subr.mxu0 0.0
    %227 = vmatpush2.msra.mxu0 0.0
    %228 = vmatprep.subr.mxu0 0.0
    %229 = vmatpush2.msra.mxu0 0.0
    %230 = vmatprep.subr.mxu0 0.0
    %231 = vmatpush2.msra.mxu0 0.0
    %232 = vmatprep.subr.mxu0 0.0
    %233 = vmatpush2.msra.mxu0 0.0
    %234 = vmatprep.subr.mxu0 0.0
    %235 = vmatpush2.msra.mxu0 0.0
    %236 = vmatprep.subr.mxu0 0.0
    %237 = vmatpush2.msra.mxu0 0.0
    %238 = vmatprep.subr.mxu0 0.0
    %239 = vmatpush2.msra.mxu0 0.0
    %240 = vmatprep.subr.mxu0 0.0
    %241 = vmatpush2.msra.mxu0 0.0
    %242 = vmatprep.subr.mxu0 0.0
    %243 = vmatpush2.msra.mxu0 0.0
    %244 = vmatprep.subr.mxu0 0.0
    %245 = vmatpush2.msra.mxu0 0.0
    %246 = vmatprep.subr.mxu0 0.0
    %247 = vmatpush2.msra.mxu0 0.0
    %248 = vmatprep.subr.mxu0 0.0
    %249 = vmatpush2.msra.mxu0 0.0
    %250 = vmatprep.subr.mxu0 0.0
    %251 = vmatpush2.msra.mxu0 0.0
    %252 = vmatprep.subr.mxu0 0.0
    %253 = vmatpush2.msra.mxu0 0.0
    %254 = vmatprep.mubr.f32.mxu0 0.0
    %255 = vmatmul.mubr.f32.gmra.mxu0 %v188
    %v256 = vpop.f32.mrf.mxu0
    %v257 = vadd.f32 %v184, %v256
    %v258 = vpop.f32.mrf.mxu0
    %259 = vdwg.mxu0
    %v260 = vmax.f32 %v257, 0.0
    %vm261 = vcmask 261120
    %262 = vst.msk [vmem:[#allocation5] sm:$0xff] %vm261, %v260
    // Predicated region
    $region26: #{tpu_custom_call.1} parent=1 // pred_check
      _
    $region27: #{tpu_custom_call.1} parent=1 // pred_check_branch
      %264 = sbr.rel (0) target = $region29
    $region28: #{tpu_custom_call.1} parent=1 // pred_region
      %s266 = ssub.s32 128, 128
      %267 = vsyncadd [#allocation4], %s266
      %s269 = sshll.u32 [#allocation5], 4
      %s270 = int_to_ptr.vmem [resolvable:$true] %s269
      %272 = dma.vmem_to_hbm [thread:$0]  %s270, 128, %s5, [#allocation4]
    $region29: #{tpu_custom_call.1} parent=1 // pred_fallthru
      _
    // Predicated region
    $region30: #{tpu_custom_call.1} parent=1 // pred_check
      _
    $region31: #{tpu_custom_call.1} parent=1 // pred_check_branch
      %274 = sbr.rel (0) target = $region33
    $region32: #{tpu_custom_call.1} parent=1 // pred_region
      %275 = dma.done [#allocation4], 128
    $region33: #{tpu_custom_call.1} parent=1 // pred_fallthru
      _
    %276 = vsyncpa [#allocation3], 1
    %277 = vsyncpa [#allocation4], 1

</llo_original>
